<compile_context>
chip_gen: v7x
topology: tpu7x:2x2x1
jax: 0.10.0
libtpu: 0.0.40
codegen_flags: <defaults>
</compile_context>

<pallas_src>
import jax
import jax.numpy as jnp
from jax.experimental import pallas as pl
from jax.experimental.pallas import tpu as pltpu


def _round_up(x, m):
    return ((x + m - 1) // m) * m


# ---------------------------------------------------------------------------
# Prefix construction (plain JAX):
#   speaker_embs = emb_table[speaker_id]                      (B, P*E)
#   prefix[b, i, :] = Linear(speaker_embs[b, i*E:(i+1)*E])    == einsum('bpe,eh->bph')
# ---------------------------------------------------------------------------
def prefix_forward(speaker_id, emb_table, w, b, prefix_len, embed_size_per_token):
    B = speaker_id.shape[0]
    emb = emb_table[speaker_id].reshape(B, prefix_len, embed_size_per_token)
    return jnp.einsum("bpe,eh->bph", emb, w) + b


# ---------------------------------------------------------------------------
# Logits projection (lm_head) kernel: (M, H) @ (H, V) -> (M, V), tiled (M, V)
# ---------------------------------------------------------------------------
def _logits_kernel(x_ref, w_ref, o_ref):
    # x_ref: (tm, H) bf16, w_ref: (H, tv) bf16, o_ref: (tm, tv) f32
    o_ref[...] = jnp.dot(
        x_ref[...], w_ref[...], preferred_element_type=jnp.float32
    ).astype(o_ref.dtype)


def logits_forward(x, w_head, *, tm=256, tv=2048):
    """x: (B, T, H); w_head: (H, V). Returns logits (B, T, V) f32."""
    B, T, H = x.shape
    V = w_head.shape[1]
    M = B * T

    # bf16 streaming inputs, f32 MXU accumulate.
    x2 = x.reshape(M, H).astype(jnp.bfloat16)
    w = w_head.astype(jnp.bfloat16)

    # Lane/sublane-aligned tiles; shrink to the problem at toy sizes.
    tm = min(tm, _round_up(M, 16))     # bf16 sublane packing: multiple of 16
    tv = min(tv, _round_up(V, 128))    # lane-dense: multiple of 128
    Mp = _round_up(M, tm)
    Vp = _round_up(V, tv)
    if Mp != M:
        x2 = jnp.pad(x2, ((0, Mp - M), (0, 0)))
    if Vp != V:
        w = jnp.pad(w, ((0, 0), (0, Vp - V)))

    grid = (Mp // tm, Vp // tv)

    # Double-buffered in/out tiles + headroom; explicit so v7x (64 MiB VMEM,
    # 32 MiB scoped default) does not OOM and v5e/v6e do not spill.
    vmem_bytes = 2 * (tm * H * 2 + H * tv * 2 + tm * tv * 4) + (4 << 20)
    vmem_bytes = min(max(int(vmem_bytes), 32 * 1024 * 1024), 64 * 1024 * 1024)

    out = pl.pallas_call(
        _logits_kernel,
        out_shape=jax.ShapeDtypeStruct((Mp, Vp), jnp.float32),
        grid=grid,
        in_specs=[
            pl.BlockSpec((tm, H), lambda m, v: (m, 0)),
            pl.BlockSpec((H, tv), lambda m, v: (0, v)),
        ],
        out_specs=pl.BlockSpec((tm, tv), lambda m, v: (m, v)),
        compiler_params=pltpu.CompilerParams(
            dimension_semantics=("parallel", "parallel"),
            vmem_limit_bytes=vmem_bytes,
        ),
    )(x2, w)
    return out[:M, :V].reshape(B, T, V)


# ---------------------------------------------------------------------------
# Full PrefixNet forward
# ---------------------------------------------------------------------------
def prefixnet_forward(just_wte, speaker_id, params, cfg):
    prefix = prefix_forward(
        speaker_id,
        params["emb_table"],
        params["lin_w"],
        params["lin_b"],
        cfg["prefix_len"],
        cfg["embed_size_per_token"],
    )                                                         # (B, P, H)
    prefix_cat = jnp.concatenate([prefix, just_wte], axis=1)  # (B, P+S, H)
    # TODO(synk): GPT-Neo transformer blocks omitted (pretrained checkpoint);
    # only the lm_head projection below is implemented.
    logits = logits_forward(prefix_cat, params["lm_head_w"])  # (B, P+S, V)
    return logits


if __name__ == "__main__":
    # Small config consistent with the module's forward.
    cfg = dict(
        batch_size=2,
        prefix_len=4,
        embed_size_per_token=32,
        speaker_size=8,
        token_size=64,     # stands in for gpt_neo.config.hidden_size
        freeze_gpt=True,
    )
    B = cfg["batch_size"]
    P = cfg["prefix_len"]
    E = cfg["embed_size_per_token"]
    H = cfg["token_size"]
    SPK = cfg["speaker_size"]
    S = 8                  # just_wte sequence length
    V = 128                # small vocab for the lm_head

    key = jax.random.PRNGKey(0)
    k_emb, k_w, k_b, k_head, k_wte, k_sid = jax.random.split(key, 6)

    params = {
        "emb_table": 0.02 * jax.random.normal(k_emb, (SPK, P * E), jnp.float32),
        "lin_w":     0.02 * jax.random.normal(k_w, (E, H), jnp.float32),
        "lin_b":     0.02 * jax.random.normal(k_b, (H,), jnp.float32),
        "lm_head_w": 0.02 * jax.random.normal(k_head, (H, V), jnp.float32),
    }

    just_wte = jax.random.normal(k_wte, (B, S, H), jnp.float32)
    speaker_id = jax.random.randint(k_sid, (B,), 0, SPK, jnp.int32)

    out = prefixnet_forward(just_wte, speaker_id, params, cfg)
    out = jax.block_until_ready(out)
    assert out.shape == (B, P + S, V), out.shape

    # Pure-JAX reference of the implemented path (matching the bf16 cast of
    # the matmul inputs; accumulation in f32).
    emb = params["emb_table"][speaker_id].reshape(B, P, E)
    prefix_ref = jnp.einsum("bpe,eh->bph", emb, params["lin_w"]) + params["lin_b"]
    cat_ref = jnp.concatenate([prefix_ref, just_wte], axis=1)
    ref = jnp.einsum(
        "bth,hv->btv",
        cat_ref.astype(jnp.bfloat16).astype(jnp.float32),
        params["lm_head_w"].astype(jnp.bfloat16).astype(jnp.float32),
    )
    assert jnp.allclose(out, ref, atol=1e-3, rtol=1e-3), float(
        jnp.max(jnp.abs(out - ref)))

    print("KERNEL_OK")
</pallas_src>

<mosaic_0001>
module attributes {stable_mosaic.version = 11 : i64} {
  func.func @_logits_kernel(%arg0: i32, %arg1: i32, %arg2: memref<32x64xbf16, #tpu.memory_space<vmem>>, %arg3: memref<64x128xbf16, #tpu.memory_space<vmem>>, %arg4: memref<32x128xf32, #tpu.memory_space<vmem>>) attributes {dimension_semantics = [#tpu.dimension_semantics<parallel>, #tpu.dimension_semantics<parallel>], iteration_bounds = array<i64: 1, 1>, scalar_prefetch = 0 : i64, scratch_operands = 0 : i64, tpu.core_type = #tpu.core_type<tc>, window_params = [{transform_indices = @transform_0, window_bounds = array<i64: 32, 64>}, {transform_indices = @transform_1, window_bounds = array<i64: 64, 128>}, {transform_indices = @transform_2, window_bounds = array<i64: 32, 128>}]} {
    %c0 = arith.constant 0 : index
    %c0_0 = arith.constant 0 : index
    %0 = vector.load %arg2[%c0, %c0_0] : memref<32x64xbf16, #tpu.memory_space<vmem>>, vector<32x64xbf16>
    %c0_1 = arith.constant 0 : index
    %c0_2 = arith.constant 0 : index
    %1 = vector.load %arg3[%c0_1, %c0_2] : memref<64x128xbf16, #tpu.memory_space<vmem>>, vector<64x128xbf16>
    %cst = arith.constant dense<0.000000e+00> : vector<32x128xf32>
    %2 = tpu.matmul %0, %1, %cst {dimension_numbers = #tpu.dot_dimension_numbers<[1], [0], [0], [1], [0, 0, 1, 1], [], []>} : vector<32x64xbf16>, vector<64x128xbf16>, vector<32x128xf32> -> vector<32x128xf32>
    %c0_3 = arith.constant 0 : index
    %c0_4 = arith.constant 0 : index
    %3 = vector.load %arg4[%c0_3, %c0_4] : memref<32x128xf32, #tpu.memory_space<vmem>>, vector<32x128xf32>
    tpu.vector_store %arg4[%c0_3, %c0_4], %2 {strides = array<i32>} : memref<32x128xf32, #tpu.memory_space<vmem>>, vector<32x128xf32>,
    return
  }
  func.func @transform_0(%arg0: i32, %arg1: i32) -> (i32, i32) {
    %c0_i32 = arith.constant 0 : i32
    %c0_i32_0 = arith.constant 0 : i32
    return %arg0, %c0_i32 : i32, i32
  }
  func.func @transform_1(%arg0: i32, %arg1: i32) -> (i32, i32) {
    %c0_i32 = arith.constant 0 : i32
    %c0_i32_0 = arith.constant 0 : i32
    return %c0_i32, %arg1 : i32, i32
  }
  func.func @transform_2(%arg0: i32, %arg1: i32) -> (i32, i32) {
    %c0_i32 = arith.constant 0 : i32
    return %arg0, %arg1 : i32, i32
  }
}

</mosaic_0001>

<llo_original>
// kernel: tpu_custom_call.1
$region0: #{tpu_custom_call.1}
  #allocation0 [shape = 'u32[]', space=smem, size = 0x4, offset = 0x4, fixed_abs, tag = 'smem constant byte address 0x4 - core index']
  #allocation1 [shape = 'u32[144,128]{1,0:T(1,128)}', space=vmem, size = 0x12000, scoped, tag = 'internal scratch']
  %s0 = inlined_call_operand.hbm [shape: bf16[32,64], index: 0, kind: input, shape index: {}]
  %s1 = inlined_call_operand.hbm [shape: bf16[64,128], index: 1, kind: input, shape index: {}]
  %s2 = inlined_call_operand.hbm [shape: f32[32,128], index: 2, kind: output, shape index: {}]
  %s3 = sld [smem:[#allocation0]]
  $region26: #{tpu_custom_call.1} parent=0
    _
  %s5 = ssub.s32 1, %s3
  %s6 = scalar_select 0, %s5, %s3
  $region1: #{tpu_custom_call.1} parent=0
    #allocation2 [shape = 'u8[8192]{0}', space=vmem, size = 0x2000, scoped, tag = 'input window, operand 0, single buffered']
    #allocation3 [shape = 's32[1]{0}', space=sflag, size = 0x4, scoped, tag = 'scoped memory for tpu_custom_call.1']
    #allocation4 [shape = 's32[1]{0}', space=sflag, size = 0x4, scoped, tag = 'scoped memory for tpu_custom_call.1']
    #allocation5 [shape = 'u8[16384]{0}', space=vmem, size = 0x4000, scoped, tag = 'input window, operand 1, single buffered']
    #allocation6 [shape = 's32[1]{0}', space=sflag, size = 0x4, scoped, tag = 'scoped memory for tpu_custom_call.1']
    #allocation7 [shape = 'u8[16384]{0}', space=vmem, size = 0x4000, scoped, tag = 'output window, operand 0, single buffered']
    %7 = vsyncpa [#allocation3], 0
    %8 = vsyncpa [#allocation6], 0
    %9 = vsyncpa [#allocation4], 0
    // Predicated region
    $region2: #{tpu_custom_call.1} parent=1 // pred_check
      _
    $region3: #{tpu_custom_call.1} parent=1 // pred_check_branch
      %11 = sbr.rel (0) target = $region5
    $region4: #{tpu_custom_call.1} parent=1 // pred_region
      %s13 = ssub.s32 256, 256
      %14 = vsyncadd [#allocation3], %s13
      %s15 = sshll.u32 [#allocation2], 4
      %s16 = int_to_ptr.vmem [resolvable:$true] %s15
      %21 = dma.hbm_to_vmem [thread:$0]  %s0, 256, %s16, [#allocation3], 64, 64, 4
    $region5: #{tpu_custom_call.1} parent=1 // pred_fallthru
      _
    // Predicated region
    $region6: #{tpu_custom_call.1} parent=1 // pred_check
      _
    $region7: #{tpu_custom_call.1} parent=1 // pred_check_branch
      %23 = sbr.rel (0) target = $region9
    $region8: #{tpu_custom_call.1} parent=1 // pred_region
      %s25 = ssub.s32 512, 512
      %26 = vsyncadd [#allocation6], %s25
      %s27 = sshll.u32 [#allocation5], 4
      %s28 = int_to_ptr.vmem [resolvable:$true] %s27
      %33 = dma.hbm_to_vmem [thread:$0]  %s1, 512, %s28, [#allocation6], 64, 64, 4
    $region9: #{tpu_custom_call.1} parent=1 // pred_fallthru
      _
    // Predicated region
    $region10: #{tpu_custom_call.1} parent=1 // pred_check
      _
    $region11: #{tpu_custom_call.1} parent=1 // pred_check_branch
      %35 = sbr.rel (0) target = $region13
    $region12: #{tpu_custom_call.1} parent=1 // pred_region
      %36 = dma.done [#allocation3], 256
    $region13: #{tpu_custom_call.1} parent=1 // pred_fallthru
      _
    // Predicated region
    $region14: #{tpu_custom_call.1} parent=1 // pred_check
      _
    $region15: #{tpu_custom_call.1} parent=1 // pred_check_branch
      %38 = sbr.rel (0) target = $region17
    $region16: #{tpu_custom_call.1} parent=1 // pred_region
      %39 = dma.done [#allocation6], 512
    $region17: #{tpu_custom_call.1} parent=1 // pred_fallthru
      _
    %v41 = vld [vmem:[#allocation2] sm:$0xf]
    %v42 = vld [vmem:[#allocation2 + $0x4] sm:$0xf]
    %v43 = vld [vmem:[#allocation2 + $0x8] sm:$0xf]
    %v44 = vld [vmem:[#allocation2 + $0xc] sm:$0xf]
    %v45 = vld [vmem:[#allocation5] sm:$0xf]
    %v46 = vld [vmem:[#allocation5 + $0x4] sm:$0xf]
    %v47 = vld [vmem:[#allocation5 + $0x8] sm:$0xf]
    %v48 = vld [vmem:[#allocation5 + $0xc] sm:$0xf]
    %v49 = vld [vmem:[#allocation5 + $0x10] sm:$0xf]
    %v50 = vld [vmem:[#allocation5 + $0x14] sm:$0xf]
    %v51 = vld [vmem:[#allocation5 + $0x18] sm:$0xf]
    %v52 = vld [vmem:[#allocation5 + $0x1c] sm:$0xf]
    %v57 = vunpack.c.l.b16 %v41
    %v58 = vunpack.c.l.b16 %v42
    %v59 = vunpack.c.l.b16 %v43
    %v60 = vunpack.c.l.b16 %v44
    %v61 = vpack.c.b16 %v58, %v57
    %v62 = vpack.c.b16 %v60, %v59
    %v71 = vunpack.c.l.b16 %v45
    %v72 = vunpack.c.l.b16 %v46
    %v73 = vunpack.c.l.b16 %v47
    %v74 = vunpack.c.l.b16 %v48
    %v75 = vunpack.c.l.b16 %v49
    %v76 = vunpack.c.l.b16 %v50
    %v77 = vunpack.c.l.b16 %v51
    %v78 = vunpack.c.l.b16 %v52
    %v79 = vpack.c.b16 %v72, %v71
    %v80 = vpack.c.b16 %v74, %v73
    %v81 = vpack.c.b16 %v76, %v75
    %v82 = vpack.c.b16 %v78, %v77
    %vm87 = vcmask 523264
    %v89 = vsel %vm87, %v61, 0
    %v92 = vsel %vm87, %v62, 0
    %94 = vmatprep.subr.bf16.mxu0 0
    %95 = vmatpush1.bf16.msra.mxu0 %v79
    %96 = vmatprep.subr.bf16.mxu0 0
    %97 = vmatpush1.bf16.msra.mxu0 %v80
    %98 = vmatprep.subr.bf16.mxu0 0
    %99 = vmatpush1.bf16.msra.mxu0 %v81
    %100 = vmatprep.subr.bf16.mxu0 0
    %101 = vmatpush1.bf16.msra.mxu0 %v82
    %102 = vmatprep.subr.bf16.mxu0 0
    %103 = vmatpush1.bf16.msra.mxu0 0
    %104 = vmatprep.subr.bf16.mxu0 0
    %105 = vmatpush1.bf16.msra.mxu0 0
    %106 = vmatprep.subr.bf16.mxu0 0
    %107 = vmatpush1.bf16.msra.mxu0 0
    %108 = vmatprep.subr.bf16.mxu0 0
    %109 = vmatpush1.bf16.msra.mxu0 0
    %110 = vmatprep.subr.bf16.mxu0 0
    %111 = vmatpush1.bf16.msra.mxu0 0
    %112 = vmatprep.subr.bf16.mxu0 0
    %113 = vmatpush1.bf16.msra.mxu0 0
    %114 = vmatprep.subr.bf16.mxu0 0
    %115 = vmatpush1.bf16.msra.mxu0 0
    %116 = vmatprep.subr.bf16.mxu0 0
    %117 = vmatpush1.bf16.msra.mxu0 0
    %118 = vmatprep.subr.bf16.mxu0 0
    %119 = vmatpush1.bf16.msra.mxu0 0
    %120 = vmatprep.subr.bf16.mxu0 0
    %121 = vmatpush1.bf16.msra.mxu0 0
    %122 = vmatprep.subr.bf16.mxu0 0
    %123 = vmatpush1.bf16.msra.mxu0 0
    %124 = vmatprep.subr.bf16.mxu0 0
    %125 = vmatpush1.bf16.msra.mxu0 0
    %126 = vmatprep.mubr.bf16.mxu0 0
    %127 = vmatmul.mubr.bf16.gmra.mrb[0].mxu0 %v89
    %v128 = vpop.f32.mrb[0].mxu0
    %v129 = vadd.f32 0.0, %v128
    %v130 = vpop.f32.mrb[0].mxu0
    %v131 = vpop.f32.mrb[0].mxu0
    %v132 = vadd.f32 0.0, %v131
    %v133 = vpop.f32.mrb[0].mxu0
    %134 = vmatprep.mubr.bf16.mxu0 0
    %135 = vmatmul.mubr.bf16.gmra.mrb[0].mxu0 %v92
    %v136 = vpop.f32.mrb[0].mxu0
    %v137 = vadd.f32 0.0, %v136
    %v138 = vpop.f32.mrb[0].mxu0
    %v139 = vpop.f32.mrb[0].mxu0
    %v140 = vadd.f32 0.0, %v139
    %v141 = vpop.f32.mrb[0].mxu0
    %142 = vdwg.mxu0
    %143 = vst [vmem:[#allocation7] sm:$0xff] %v129
    %144 = vst [vmem:[#allocation7 + $0x8] sm:$0xff] %v132
    %145 = vst [vmem:[#allocation7 + $0x10] sm:$0xff] %v137
    %146 = vst [vmem:[#allocation7 + $0x18] sm:$0xff] %v140
    // Predicated region
    $region18: #{tpu_custom_call.1} parent=1 // pred_check
      _
    $region19: #{tpu_custom_call.1} parent=1 // pred_check_branch
      %148 = sbr.rel (0) target = $region21
    $region20: #{tpu_custom_call.1} parent=1 // pred_region
      %s150 = ssub.s32 512, 512
      %151 = vsyncadd [#allocation4], %s150
      %s152 = sshll.u32 [#allocation7], 4
      %s153 = int_to_ptr.vmem [resolvable:$true] %s152
      %158 = dma.vmem_to_hbm [thread:$0]  %s153, 512, %s2, [#allocation4], 128, 128, 8
    $region21: #{tpu_custom_call.1} parent=1 // pred_fallthru
      _
    // Predicated region
    $region22: #{tpu_custom_call.1} parent=1 // pred_check
      _
    $region23: #{tpu_custom_call.1} parent=1 // pred_check_branch
      %160 = sbr.rel (0) target = $region25
    $region24: #{tpu_custom_call.1} parent=1 // pred_region
      %161 = dma.done [#allocation4], 512
    $region25: #{tpu_custom_call.1} parent=1 // pred_fallthru
      _
    %162 = vsyncpa [#allocation3], 1
    %163 = vsyncpa [#allocation6], 1
    %164 = vsyncpa [#allocation4], 1

</llo_original>
